<compile_context>
chip_gen: v5e
topology: v5e:2x2
jax: 0.10.0
libtpu: 0.0.40
codegen_flags: <defaults>
</compile_context>

<pallas_src>
import jax
import jax.numpy as jnp
from jax.experimental import pallas as pl
from jax.experimental.pallas import tpu as pltpu

_EPS = 1e-12
_LANES = 128
_SUBLANES = 8
_DEFAULT_MAX_ROW_TILE = 4096  # (4096, 128) f32 block = 2 MiB per grid step


def _round_up(x, m):
    return ((x + m - 1) // m) * m


def _make_entropy_kernel(row_tile, valid_rows, needs_mask):
    def kernel(x_ref, o_ref):
        x = x_ref[...].astype(jnp.float32)
        if needs_mask:
            i = pl.program_id(0)
            row_ids = i * row_tile + jax.lax.broadcasted_iota(
                jnp.int32, (row_tile, _LANES), 0
            )
            # Mask BEFORE the log: out-of-bounds rows of the ragged last block
            # hold unspecified values that could otherwise become NaN.
            x = jnp.where(row_ids < valid_rows, x, 0.0)
        term = x * jnp.log(x + _EPS)  # zeroed rows contribute exactly 0
        # vreg-aligned partial reduction (row_tile, 128) -> (8, 128):
        # sublane-aligned VPU adds only; the cross-lane reduce to a scalar
        # happens once in the wrapper.
        partial = term.reshape(row_tile // _SUBLANES, _SUBLANES, _LANES).sum(axis=0)
        o_ref[...] = partial[None, :, :]

    return kernel


def entropy_loss(x, *, max_row_tile=_DEFAULT_MAX_ROW_TILE):
    """Pallas implementation of EntropyLoss.forward for (B, C, ...) input."""
    shape = x.shape
    assert len(shape) >= 2, "EntropyLoss expects at least (B, C) input"
    channels = shape[1]
    numel = 1
    for s in shape:
        numel *= s
    # mean is taken over all dims except the channel dim that was summed away
    mean_denom = numel // channels

    itemsize = jnp.dtype(x.dtype).itemsize
    pack = _SUBLANES * max(1, 4 // itemsize)  # 8 (f32) / 16 (bf16) / 32 (int8)

    flat = x.reshape(-1)  # native dtype; no wrapper-side cast
    rows = pl.cdiv(numel, _LANES)

    if rows >= max_row_tile:
        row_tile = _round_up(max_row_tile, pack)
        rows_slab = rows  # no row padding; in-kernel mask handles the tail
    else:
        row_tile = _round_up(rows, pack)  # single small block
        rows_slab = row_tile

    pad = rows_slab * _LANES - numel
    if pad:
        # Only for lane-misaligned or tiny inputs; padded zeros contribute
        # exactly 0 to the sum (0 * log(0 + eps) == 0).
        flat = jnp.pad(flat, (0, pad))
    slab = flat.reshape(rows_slab, _LANES)

    num_blocks = pl.cdiv(rows_slab, row_tile)
    needs_mask = (rows_slab % row_tile) != 0

    kernel = _make_entropy_kernel(row_tile, rows_slab, needs_mask)

    out_bytes = num_blocks * _SUBLANES * _LANES * 4
    cost = pl.CostEstimate(
        flops=3 * numel,
        transcendentals=numel,
        bytes_accessed=numel * itemsize + out_bytes,
    )

    partials = pl.pallas_call(
        kernel,
        out_shape=jax.ShapeDtypeStruct(
            (num_blocks, _SUBLANES, _LANES), jnp.float32
        ),
        grid=(num_blocks,),
        in_specs=[pl.BlockSpec((row_tile, _LANES), lambda i: (i, 0))],
        out_specs=pl.BlockSpec((1, _SUBLANES, _LANES), lambda i: (i, 0, 0)),
        compiler_params=pltpu.CompilerParams(
            dimension_semantics=("parallel",),
        ),
        cost_estimate=cost,
    )(slab)

    total = jnp.sum(partials)  # tiny final reduction in XLA
    return -total / jnp.float32(mean_denom)


def entropy_loss_ref(x):
    xf = x.astype(jnp.float32)
    b = xf * jnp.log(xf + _EPS)
    b = -1.0 * b.sum(axis=1)
    return b.mean()


if __name__ == "__main__":
    key = jax.random.PRNGKey(0)
    k1, k2 = jax.random.split(key)

    # Primary check: small NCHW probabilities (softmax over channels).
    B, C, H, W = 2, 4, 16, 16
    x1 = jax.nn.softmax(jax.random.normal(k1, (B, C, H, W), jnp.float32), axis=1)
    out1 = jax.block_until_ready(entropy_loss(x1))
    ref1 = jax.block_until_ready(entropy_loss_ref(x1))
    assert jnp.allclose(out1, ref1, rtol=1e-5, atol=1e-6), (out1, ref1)

    # Second check exercising the multi-block / ragged-tail mask path by
    # shrinking the row tile: 12 rows of 128 lanes, tile of 8 -> 2 blocks,
    # the last one partially out of bounds and masked in-kernel.
    x2 = jax.nn.softmax(jax.random.normal(k2, (2, 3, 16, 16), jnp.float32), axis=1)
    out2 = jax.block_until_ready(entropy_loss(x2, max_row_tile=8))
    ref2 = jax.block_until_ready(entropy_loss_ref(x2))
    assert jnp.allclose(out2, ref2, rtol=1e-5, atol=1e-6), (out2, ref2)

    print("KERNEL_OK")
</pallas_src>

<mosaic_0001>
module attributes {stable_mosaic.version = 11 : i64} {
  func.func @kernel(%arg0: i32, %arg1: memref<16x128xf32, #tpu.memory_space<vmem>>, %arg2: memref<1x8x128xf32, #tpu.memory_space<vmem>>) attributes {dimension_semantics = [#tpu.dimension_semantics<parallel>], iteration_bounds = array<i64: 1>, scalar_prefetch = 0 : i64, scratch_operands = 0 : i64, tpu.core_type = #tpu.core_type<tc>, window_params = [{transform_indices = @transform_0, window_bounds = array<i64: 16, 128>}, {transform_indices = @transform_1, window_bounds = array<i64: 1, 8, 128>}]} {
    %c0 = arith.constant 0 : index
    %c0_0 = arith.constant 0 : index
    %0 = vector.load %arg1[%c0, %c0_0] : memref<16x128xf32, #tpu.memory_space<vmem>>, vector<16x128xf32>
    %cst = arith.constant 9.99999996E-13 : f32
    %1 = vector.broadcast %cst : f32 to vector<16x128xf32>
    %2 = arith.addf %0, %1 : vector<16x128xf32>
    %3 = math.log %2 : vector<16x128xf32>
    %4 = arith.mulf %0, %3 : vector<16x128xf32>
    %5 = vector.shape_cast %4 : vector<16x128xf32> to vector<2x8x128xf32>
    %cst_1 = arith.constant dense<0.000000e+00> : vector<8x128xf32>
    %6 = vector.multi_reduction <add>, %5, %cst_1 [0] : vector<2x8x128xf32> to vector<8x128xf32>
    %7 = vector.shape_cast %6 : vector<8x128xf32> to vector<1x8x128xf32>
    %c0_2 = arith.constant 0 : index
    %c0_3 = arith.constant 0 : index
    %c0_4 = arith.constant 0 : index
    %8 = vector.load %arg2[%c0_2, %c0_3, %c0_4] : memref<1x8x128xf32, #tpu.memory_space<vmem>>, vector<1x8x128xf32>
    tpu.vector_store %arg2[%c0_2, %c0_3, %c0_4], %7 {strides = array<i32>} : memref<1x8x128xf32, #tpu.memory_space<vmem>>, vector<1x8x128xf32>,
    return
  }
  func.func @transform_0(%arg0: i32) -> (i32, i32) {
    %c0_i32 = arith.constant 0 : i32
    %c0_i32_0 = arith.constant 0 : i32
    return %arg0, %c0_i32 : i32, i32
  }
  func.func @transform_1(%arg0: i32) -> (i32, i32, i32) {
    %c0_i32 = arith.constant 0 : i32
    %c0_i32_0 = arith.constant 0 : i32
    %c0_i32_1 = arith.constant 0 : i32
    return %arg0, %c0_i32, %c0_i32_0 : i32, i32, i32
  }
}

</mosaic_0001>

<llo_original>
// kernel: tpu_custom_call.1
$region0: #{tpu_custom_call.1}
  #allocation0 [shape = 'u32[]', space=smem, size = 0x4, offset = 0x4, fixed_abs, tag = 'smem constant byte address 0x4 - core index']
  #allocation1 [shape = 'u32[72,128]{1,0:T(1,128)}', space=vmem, size = 0x9000, scoped, tag = 'internal scratch']
  %s0 = inlined_call_operand.hbm [shape: f32[16,128], index: 0, kind: input, shape index: {}]
  %s1 = inlined_call_operand.hbm [shape: f32[1,8,128], index: 1, kind: output, shape index: {}]
  %s2 = sld [smem:[#allocation0]]
  $region18: #{tpu_custom_call.1} parent=0
    _
  %s4 = ssub.s32 1, %s2
  %s5 = scalar_select 0, %s4, %s2
  $region1: #{tpu_custom_call.1} parent=0
    #allocation2 [shape = 'u8[8192]{0}', space=vmem, size = 0x2000, scoped, tag = 'input window, operand 0, single buffered']
    #allocation3 [shape = 's32[1]{0}', space=sflag, size = 0x4, scoped, tag = 'scoped memory for tpu_custom_call.1']
    #allocation4 [shape = 's32[1]{0}', space=sflag, size = 0x4, scoped, tag = 'scoped memory for tpu_custom_call.1']
    #allocation5 [shape = 'u8[4096]{0}', space=vmem, size = 0x1000, scoped, tag = 'output window, operand 0, single buffered']
    %6 = vsyncpa [#allocation3], 0
    %7 = vsyncpa [#allocation4], 0
    // Predicated region
    $region2: #{tpu_custom_call.1} parent=1 // pred_check
      _
    $region3: #{tpu_custom_call.1} parent=1 // pred_check_branch
      %9 = sbr.rel (0) target = $region5
    $region4: #{tpu_custom_call.1} parent=1 // pred_region
      %11 = vsyncadd [#allocation3], 0
      %s12 = sshll.u32 %s0, 4
      %s13 = int_to_ptr.hbm [resolvable:$true] %s12
      %s14 = sshll.u32 [#allocation2], 4
      %s15 = int_to_ptr.vmem [resolvable:$true] %s14
      %20 = dma.hbm_to_vmem [thread:$0]  %s13, 256, %s15, [#allocation3], 128, 128, 8
    $region5: #{tpu_custom_call.1} parent=1 // pred_fallthru
      _
    // Predicated region
    $region6: #{tpu_custom_call.1} parent=1 // pred_check
      _
    $region7: #{tpu_custom_call.1} parent=1 // pred_check_branch
      %22 = sbr.rel (0) target = $region9
    $region8: #{tpu_custom_call.1} parent=1 // pred_region
      %24 = dma.done [#allocation3], 256
    $region9: #{tpu_custom_call.1} parent=1 // pred_fallthru
      _
    %v25 = vld [vmem:[#allocation2] sm:$0xff]
    %v26 = vld [vmem:[#allocation2 + $0x8] sm:$0xff]
    %v27 = vadd.f32 %v25, 1e-12
    %v28 = vadd.f32 %v26, 1e-12
    %v29 = vlog2.pop %v27
    %v30 = vmul.f32 %v29, 0.6931472
    %v31 = vlog2.pop %v28
    %v32 = vmul.f32 %v31, 0.6931472
    %v33 = vmul.f32 %v25, %v30
    %v34 = vmul.f32 %v26, %v32
    %v35 = vadd.f32 %v33, %v34
    %36 = vst [vmem:[#allocation5] sm:$0xff] %v35
    // Predicated region
    $region10: #{tpu_custom_call.1} parent=1 // pred_check
      _
    $region11: #{tpu_custom_call.1} parent=1 // pred_check_branch
      %38 = sbr.rel (0) target = $region13
    $region12: #{tpu_custom_call.1} parent=1 // pred_region
      %40 = vsyncadd [#allocation4], 0
      %s42 = sshll.u32 [#allocation5], 4
      %s43 = int_to_ptr.vmem [resolvable:$true] %s42
      %s44 = sshll.u32 %s1, 4
      %s45 = int_to_ptr.hbm [resolvable:$true] %s44
      %47 = dma.vmem_to_hbm [thread:$0]  %s43, 128, %s45, [#allocation4]
    $region13: #{tpu_custom_call.1} parent=1 // pred_fallthru
      _
    // Predicated region
    $region14: #{tpu_custom_call.1} parent=1 // pred_check
      _
    $region15: #{tpu_custom_call.1} parent=1 // pred_check_branch
      %49 = sbr.rel (0) target = $region17
    $region16: #{tpu_custom_call.1} parent=1 // pred_region
      %51 = dma.done [#allocation4], 128
    $region17: #{tpu_custom_call.1} parent=1 // pred_fallthru
      _
    %52 = vsyncpa [#allocation3], 1
    %53 = vsyncpa [#allocation4], 1

</llo_original>
